<compile_context>
chip_gen: v5e
topology: v5e:2x2
jax: 0.10.0
libtpu: 0.0.40
codegen_flags: <defaults>
</compile_context>

<pallas_src>
import jax
import jax.numpy as jnp
from jax.experimental import pallas as pl
from jax.experimental.pallas import tpu as pltpu


def _round_up(x, m):
    return (x + m - 1) // m * m


def fused_rnn_kernel(x_ref, h0_ref, wx_ref, wh_ref, bi_ref, wo_ref, bo_ref,
                     out_ref, hfin_ref, h_scr):
    """One grid step == one RNN timestep. Hidden state carried in VMEM scratch."""
    t = pl.program_id(0)

    @pl.when(t == 0)
    def _():
        h_scr[...] = h0_ref[...]

    h = h_scr[...]

    # pre_h = x @ Wx + h @ Wh + b_i2h   (concat-free i2h)
    pre_h = (jnp.dot(x_ref[...], wx_ref[...], preferred_element_type=jnp.float32)
             + jnp.dot(h, wh_ref[...], preferred_element_type=jnp.float32)
             + bi_ref[...])
    h_new = jnp.tanh(pre_h)

    # out_t = h_new @ W_h2o + b_h2o
    out = jnp.dot(h_new, wo_ref[...],
                  preferred_element_type=jnp.float32) + bo_ref[...]

    out_ref[...] = out.astype(out_ref.dtype)
    h_scr[...] = h_new

    # Final hidden state goes back to HBM exactly once, at the last step.
    @pl.when(t == pl.num_programs(0) - 1)
    def _():
        hfin_ref[...] = h_new.astype(hfin_ref.dtype)


def recognition_rnn_sequence(xs, h0, params):
    """Run the RecognitionRNN cell over a whole sequence in one pallas_call.

    xs: (T, B, obs_dim) trajectory (caller orders it, e.g. backwards in time).
    h0: (B, nhidden) initial hidden state.
    Returns (outs, h_final): outs (T, B, latent_dim*2), h_final (B, nhidden).
    """
    T, B, obs_dim = xs.shape
    nhidden = h0.shape[1]
    w_i2h, b_i2h = params["w_i2h"], params["b_i2h"]
    w_h2o, b_h2o = params["w_h2o"], params["b_h2o"]
    out_dim = w_h2o.shape[1]

    # Split i2h weight so the kernel never concatenates along the lane axis.
    wx = w_i2h[:obs_dim, :]        # (obs_dim, nhidden)
    wh = w_i2h[obs_dim:, :]        # (nhidden, nhidden)

    # Lane/sublane-dense padded sizes.
    BP = _round_up(B, 8)
    OBSP = _round_up(obs_dim, 128)
    HP = _round_up(nhidden, 128)
    OUTP = _round_up(out_dim, 128)

    f32 = jnp.float32
    xs_p = jnp.zeros((T, BP, OBSP), f32).at[:, :B, :obs_dim].set(xs.astype(f32))
    h0_p = jnp.zeros((BP, HP), f32).at[:B, :nhidden].set(h0.astype(f32))
    wx_p = jnp.zeros((OBSP, HP), f32).at[:obs_dim, :nhidden].set(wx)
    wh_p = jnp.zeros((HP, HP), f32).at[:nhidden, :nhidden].set(wh)
    bi_p = jnp.zeros((1, HP), f32).at[:, :nhidden].set(b_i2h)
    wo_p = jnp.zeros((HP, OUTP), f32).at[:nhidden, :out_dim].set(w_h2o)
    bo_p = jnp.zeros((1, OUTP), f32).at[:, :out_dim].set(b_h2o)

    const2 = lambda t: (0, 0)   # resident blocks: same tile every step
    in_specs = [
        pl.BlockSpec((None, BP, OBSP), lambda t: (t, 0, 0)),   # x_t (streamed)
        pl.BlockSpec((BP, HP), const2),                        # h0
        pl.BlockSpec((OBSP, HP), const2),                      # Wx
        pl.BlockSpec((HP, HP), const2),                        # Wh
        pl.BlockSpec((1, HP), const2),                         # b_i2h
        pl.BlockSpec((HP, OUTP), const2),                      # W_h2o
        pl.BlockSpec((1, OUTP), const2),                       # b_h2o
    ]
    out_specs = (
        pl.BlockSpec((None, BP, OUTP), lambda t: (t, 0, 0)),   # out_t per step
        pl.BlockSpec((BP, HP), const2),                        # final hidden
    )

    cost = pl.CostEstimate(
        flops=2 * T * BP * (OBSP * HP + HP * HP + HP * OUTP),
        transcendentals=T * BP * HP,
        bytes_accessed=4 * (xs_p.size + h0_p.size + wx_p.size + wh_p.size
                            + bi_p.size + wo_p.size + bo_p.size
                            + T * BP * OUTP + BP * HP),
    )

    outs_p, hfin_p = pl.pallas_call(
        fused_rnn_kernel,
        out_shape=(
            jax.ShapeDtypeStruct((T, BP, OUTP), f32),
            jax.ShapeDtypeStruct((BP, HP), f32),
        ),
        grid=(T,),
        in_specs=in_specs,
        out_specs=out_specs,
        scratch_shapes=[pltpu.VMEM((BP, HP), f32)],
        compiler_params=pltpu.CompilerParams(
            dimension_semantics=("arbitrary",)),   # time steps carry state
        cost_estimate=cost,
    )(xs_p, h0_p, wx_p, wh_p, bi_p, wo_p, bo_p)

    return outs_p[:, :B, :out_dim], hfin_p[:B, :nhidden]


def recognition_rnn_forward(x, h, params):
    """Single RNN-cell step, identical to RecognitionRNN.forward(x, h)."""
    outs, h_new = recognition_rnn_sequence(x[None], h, params)
    return outs[0], h_new


def init_params(key, latent_dim=4, obs_dim=2, nhidden=25):
    """Deterministic synthetic parameters (PyTorch Linear-style init, stored
    transposed as (in_features, out_features) for the kernel)."""
    k1, k2, k3, k4 = jax.random.split(key, 4)
    in_i2h = obs_dim + nhidden
    bound_i2h = 1.0 / jnp.sqrt(in_i2h)
    bound_h2o = 1.0 / jnp.sqrt(nhidden)
    return {
        "w_i2h": jax.random.uniform(k1, (in_i2h, nhidden), jnp.float32,
                                    -bound_i2h, bound_i2h),
        "b_i2h": jax.random.uniform(k2, (1, nhidden), jnp.float32,
                                    -bound_i2h, bound_i2h),
        "w_h2o": jax.random.uniform(k3, (nhidden, latent_dim * 2), jnp.float32,
                                    -bound_h2o, bound_h2o),
        "b_h2o": jax.random.uniform(k4, (1, latent_dim * 2), jnp.float32,
                                    -bound_h2o, bound_h2o),
    }


if __name__ == "__main__":
    latent_dim, obs_dim, nhidden, nbatch, seq_len = 4, 2, 25, 2, 8

    key = jax.random.PRNGKey(0)
    kp, kx = jax.random.split(key)
    params = init_params(kp, latent_dim, obs_dim, nhidden)

    # Example trajectory (the training loop would feed it backwards in time).
    xs = jax.random.normal(kx, (seq_len, nbatch, obs_dim), jnp.float32)
    h0 = jnp.zeros((nbatch, nhidden), jnp.float32)   # initHidden()

    # Fused sequence: one pallas_call for all T steps.
    outs, h_final = recognition_rnn_sequence(xs, h0, params)
    jax.block_until_ready((outs, h_final))

    # Single step (exact module forward signature).
    out_step, h_step = recognition_rnn_forward(xs[0], h0, params)
    jax.block_until_ready((out_step, h_step))

    # Reference in plain JAX (same math as the PyTorch module).
    def ref_cell(x, h):
        combined = jnp.concatenate([x, h], axis=1)
        h_new = jnp.tanh(combined @ params["w_i2h"] + params["b_i2h"])
        return h_new @ params["w_h2o"] + params["b_h2o"], h_new

    h_ref = h0
    outs_ref = []
    for t in range(seq_len):
        o_t, h_ref = ref_cell(xs[t], h_ref)
        outs_ref.append(o_t)
    outs_ref = jnp.stack(outs_ref)

    out0_ref, h0_ref_step = ref_cell(xs[0], h0)

    assert jnp.allclose(outs, outs_ref, atol=1e-4, rtol=1e-4), "sequence output mismatch"
    assert jnp.allclose(h_final, h_ref, atol=1e-4, rtol=1e-4), "final hidden mismatch"
    assert jnp.allclose(out_step, out0_ref, atol=1e-4, rtol=1e-4), "single-step output mismatch"
    assert jnp.allclose(h_step, h0_ref_step, atol=1e-4, rtol=1e-4), "single-step hidden mismatch"

    print("KERNEL_OK")
</pallas_src>

<mosaic_0001>
module attributes {stable_mosaic.version = 11 : i64} {
  func.func @fused_rnn_kernel(%arg0: i32, %arg1: memref<1x8x128xf32, #tpu.memory_space<vmem>>, %arg2: memref<8x128xf32, #tpu.memory_space<vmem>>, %arg3: memref<128x128xf32, #tpu.memory_space<vmem>>, %arg4: memref<128x128xf32, #tpu.memory_space<vmem>>, %arg5: memref<1x128xf32, #tpu.memory_space<vmem>>, %arg6: memref<128x128xf32, #tpu.memory_space<vmem>>, %arg7: memref<1x128xf32, #tpu.memory_space<vmem>>, %arg8: memref<1x8x128xf32, #tpu.memory_space<vmem>>, %arg9: memref<8x128xf32, #tpu.memory_space<vmem>>, %arg10: memref<8x128xf32, #tpu.memory_space<vmem>>) attributes {dimension_semantics = [#tpu.dimension_semantics<arbitrary>], iteration_bounds = array<i64: 8>, scalar_prefetch = 0 : i64, scratch_operands = 1 : i64, tpu.core_type = #tpu.core_type<tc>, window_params = [{transform_indices = @transform_0, window_bounds = array<i64: 1, 8, 128>}, {pipeline_mode = #tpu.pipeline_mode<synchronous>, transform_indices = @transform_1, window_bounds = array<i64: 8, 128>}, {pipeline_mode = #tpu.pipeline_mode<synchronous>, transform_indices = @transform_2, window_bounds = array<i64: 128, 128>}, {pipeline_mode = #tpu.pipeline_mode<synchronous>, transform_indices = @transform_3, window_bounds = array<i64: 128, 128>}, {pipeline_mode = #tpu.pipeline_mode<synchronous>, transform_indices = @transform_4, window_bounds = array<i64: 1, 128>}, {pipeline_mode = #tpu.pipeline_mode<synchronous>, transform_indices = @transform_5, window_bounds = array<i64: 128, 128>}, {pipeline_mode = #tpu.pipeline_mode<synchronous>, transform_indices = @transform_6, window_bounds = array<i64: 1, 128>}, {transform_indices = @transform_7, window_bounds = array<i64: 1, 8, 128>}, {pipeline_mode = #tpu.pipeline_mode<synchronous>, transform_indices = @transform_8, window_bounds = array<i64: 8, 128>}]} {
    %c0_i32 = arith.constant 0 : i32
    %0 = arith.cmpi eq, %arg0, %c0_i32 : i32
    %1 = arith.extui %0 : i1 to i32
    %c0_i32_0 = arith.constant 0 : i32
    %2 = arith.cmpi ne, %1, %c0_i32_0 : i32
    scf.if %2 {
      %c0_23 = arith.constant 0 : index
      %c0_24 = arith.constant 0 : index
      %27 = vector.load %arg2[%c0_23, %c0_24] : memref<8x128xf32, #tpu.memory_space<vmem>>, vector<8x128xf32>
      %c0_25 = arith.constant 0 : index
      %c0_26 = arith.constant 0 : index
      %28 = vector.load %arg10[%c0_25, %c0_26] : memref<8x128xf32, #tpu.memory_space<vmem>>, vector<8x128xf32>
      tpu.vector_store %arg10[%c0_25, %c0_26], %27 {strides = array<i32>} : memref<8x128xf32, #tpu.memory_space<vmem>>, vector<8x128xf32>,
    } else {
    }
    %c0 = arith.constant 0 : index
    %c0_1 = arith.constant 0 : index
    %3 = vector.load %arg10[%c0, %c0_1] : memref<8x128xf32, #tpu.memory_space<vmem>>, vector<8x128xf32>
    %c0_2 = arith.constant 0 : index
    %c0_3 = arith.constant 0 : index
    %c0_4 = arith.constant 0 : index
    %4 = vector.load %arg1[%c0_2, %c0_3, %c0_4] : memref<1x8x128xf32, #tpu.memory_space<vmem>>, vector<1x8x128xf32>
    %5 = vector.shape_cast %4 : vector<1x8x128xf32> to vector<8x128xf32>
    %c0_5 = arith.constant 0 : index
    %c0_6 = arith.constant 0 : index
    %6 = vector.load %arg3[%c0_5, %c0_6] : memref<128x128xf32, #tpu.memory_space<vmem>>, vector<128x128xf32>
    %cst = arith.constant dense<0.000000e+00> : vector<8x128xf32>
    %7 = tpu.matmul %5, %6, %cst {dimension_numbers = #tpu.dot_dimension_numbers<[1], [0], [0], [1], [0, 0, 1, 1], [], []>} : vector<8x128xf32>, vector<128x128xf32>, vector<8x128xf32> -> vector<8x128xf32>
    %c0_7 = arith.constant 0 : index
    %c0_8 = arith.constant 0 : index
    %8 = vector.load %arg4[%c0_7, %c0_8] : memref<128x128xf32, #tpu.memory_space<vmem>>, vector<128x128xf32>
    %cst_9 = arith.constant dense<0.000000e+00> : vector<8x128xf32>
    %9 = tpu.matmul %3, %8, %cst_9 {dimension_numbers = #tpu.dot_dimension_numbers<[1], [0], [0], [1], [0, 0, 1, 1], [], []>} : vector<8x128xf32>, vector<128x128xf32>, vector<8x128xf32> -> vector<8x128xf32>
    %10 = arith.addf %7, %9 : vector<8x128xf32>
    %c0_10 = arith.constant 0 : index
    %c0_11 = arith.constant 0 : index
    %11 = vector.load %arg5[%c0_10, %c0_11] : memref<1x128xf32, #tpu.memory_space<vmem>>, vector<1x128xf32>
    %12 = vector.broadcast %11 : vector<1x128xf32> to vector<8x128xf32>
    %13 = arith.addf %10, %12 : vector<8x128xf32>
    %14 = math.tanh %13 : vector<8x128xf32>
    %c0_12 = arith.constant 0 : index
    %c0_13 = arith.constant 0 : index
    %15 = vector.load %arg6[%c0_12, %c0_13] : memref<128x128xf32, #tpu.memory_space<vmem>>, vector<128x128xf32>
    %cst_14 = arith.constant dense<0.000000e+00> : vector<8x128xf32>
    %16 = tpu.matmul %14, %15, %cst_14 {dimension_numbers = #tpu.dot_dimension_numbers<[1], [0], [0], [1], [0, 0, 1, 1], [], []>} : vector<8x128xf32>, vector<128x128xf32>, vector<8x128xf32> -> vector<8x128xf32>
    %c0_15 = arith.constant 0 : index
    %c0_16 = arith.constant 0 : index
    %17 = vector.load %arg7[%c0_15, %c0_16] : memref<1x128xf32, #tpu.memory_space<vmem>>, vector<1x128xf32>
    %18 = vector.broadcast %17 : vector<1x128xf32> to vector<8x128xf32>
    %19 = arith.addf %16, %18 : vector<8x128xf32>
    %c0_17 = arith.constant 0 : index
    %c0_18 = arith.constant 0 : index
    %c0_19 = arith.constant 0 : index
    %20 = vector.load %arg8[%c0_17, %c0_18, %c0_19] : memref<1x8x128xf32, #tpu.memory_space<vmem>>, vector<1x8x128xf32>
    %21 = vector.shape_cast %20 : vector<1x8x128xf32> to vector<8x128xf32>
    %22 = vector.shape_cast %19 : vector<8x128xf32> to vector<1x8x128xf32>
    tpu.vector_store %arg8[%c0_17, %c0_18, %c0_19], %22 {strides = array<i32>} : memref<1x8x128xf32, #tpu.memory_space<vmem>>, vector<1x8x128xf32>,
    %c0_20 = arith.constant 0 : index
    %c0_21 = arith.constant 0 : index
    %23 = vector.load %arg10[%c0_20, %c0_21] : memref<8x128xf32, #tpu.memory_space<vmem>>, vector<8x128xf32>
    tpu.vector_store %arg10[%c0_20, %c0_21], %14 {strides = array<i32>} : memref<8x128xf32, #tpu.memory_space<vmem>>, vector<8x128xf32>,
    %c7_i32 = arith.constant 7 : i32
    %24 = arith.cmpi eq, %arg0, %c7_i32 : i32
    %25 = arith.extui %24 : i1 to i32
    %c0_i32_22 = arith.constant 0 : i32
    %26 = arith.cmpi ne, %25, %c0_i32_22 : i32
    scf.if %26 {
      %c0_23 = arith.constant 0 : index
      %c0_24 = arith.constant 0 : index
      %27 = vector.load %arg9[%c0_23, %c0_24] : memref<8x128xf32, #tpu.memory_space<vmem>>, vector<8x128xf32>
      tpu.vector_store %arg9[%c0_23, %c0_24], %14 {strides = array<i32>} : memref<8x128xf32, #tpu.memory_space<vmem>>, vector<8x128xf32>,
    } else {
    }
    return
  }
  func.func @transform_0(%arg0: i32) -> (i32, i32, i32) {
    %c0_i32 = arith.constant 0 : i32
    %c0_i32_0 = arith.constant 0 : i32
    %c0_i32_1 = arith.constant 0 : i32
    return %arg0, %c0_i32, %c0_i32_0 : i32, i32, i32
  }
  func.func @transform_1(%arg0: i32) -> (i32, i32) {
    %c0_i32 = arith.constant 0 : i32
    %c0_i32_0 = arith.constant 0 : i32
    %c0_i32_1 = arith.constant 0 : i32
    return %c0_i32, %c0_i32_0 : i32, i32
  }
  func.func @transform_2(%arg0: i32) -> (i32, i32) {
    %c0_i32 = arith.constant 0 : i32
    %c0_i32_0 = arith.constant 0 : i32
    %c0_i32_1 = arith.constant 0 : i32
    return %c0_i32, %c0_i32_0 : i32, i32
  }
  func.func @transform_3(%arg0: i32) -> (i32, i32) {
    %c0_i32 = arith.constant 0 : i32
    %c0_i32_0 = arith.constant 0 : i32
    %c0_i32_1 = arith.constant 0 : i32
    return %c0_i32, %c0_i32_0 : i32, i32
  }
  func.func @transform_4(%arg0: i32) -> (i32, i32) {
    %c0_i32 = arith.constant 0 : i32
    %c0_i32_0 = arith.constant 0 : i32
    %c0_i32_1 = arith.constant 0 : i32
    return %c0_i32, %c0_i32_0 : i32, i32
  }
  func.func @transform_5(%arg0: i32) -> (i32, i32) {
    %c0_i32 = arith.constant 0 : i32
    %c0_i32_0 = arith.constant 0 : i32
    %c0_i32_1 = arith.constant 0 : i32
    return %c0_i32, %c0_i32_0 : i32, i32
  }
  func.func @transform_6(%arg0: i32) -> (i32, i32) {
    %c0_i32 = arith.constant 0 : i32
    %c0_i32_0 = arith.constant 0 : i32
    %c0_i32_1 = arith.constant 0 : i32
    return %c0_i32, %c0_i32_0 : i32, i32
  }
  func.func @transform_7(%arg0: i32) -> (i32, i32, i32) {
    %c0_i32 = arith.constant 0 : i32
    %c0_i32_0 = arith.constant 0 : i32
    %c0_i32_1 = arith.constant 0 : i32
    return %arg0, %c0_i32, %c0_i32_0 : i32, i32, i32
  }
  func.func @transform_8(%arg0: i32) -> (i32, i32) {
    %c0_i32 = arith.constant 0 : i32
    %c0_i32_0 = arith.constant 0 : i32
    %c0_i32_1 = arith.constant 0 : i32
    return %c0_i32, %c0_i32_0 : i32, i32
  }
}

</mosaic_0001>

<llo_original>
// kernel: tpu_custom_call.1
$region0: #{tpu_custom_call.1}
  #allocation0 [shape = 'u32[]', space=smem, size = 0x4, offset = 0x4, fixed_abs, tag = 'smem constant byte address 0x4 - core index']
  #allocation1 [shape = 'u32[72,128]{1,0:T(1,128)}', space=vmem, size = 0x9000, scoped, tag = 'internal scratch']
  #allocation2 [shape = 'f32[8,128]{1,0:T(8,128)}', space=vmem, size = 0x1000, scoped, tag = 'scratch operand']
  %s0 = inlined_call_operand.hbm [shape: f32[8,8,128], index: 0, kind: input, shape index: {}]
  %s1 = inlined_call_operand.hbm [shape: f32[8,128], index: 1, kind: input, shape index: {}]
  %s2 = inlined_call_operand.hbm [shape: f32[128,128], index: 2, kind: input, shape index: {}]
  %s3 = inlined_call_operand.hbm [shape: f32[128,128], index: 3, kind: input, shape index: {}]
  %s4 = inlined_call_operand.vmem [shape: f32[1,128], index: 4, kind: input, shape index: {}]
  %s5 = inlined_call_operand.hbm [shape: f32[128,128], index: 5, kind: input, shape index: {}]
  %s6 = inlined_call_operand.vmem [shape: f32[1,128], index: 6, kind: input, shape index: {}]
  %s7 = inlined_call_operand.hbm [shape: f32[8,8,128], index: 7, kind: output, shape index: {0}]
  %s8 = inlined_call_operand.hbm [shape: f32[8,128], index: 8, kind: output, shape index: {1}]
  %9 = xla_tuple %s7, %s8
  %s10 = sld [smem:[#allocation0]]
  $region97: #{tpu_custom_call.1} parent=0
    _
  %s12 = ssub.s32 1, %s10
  %s13 = scalar_select 0, %s12, %s10
  $region1: #{tpu_custom_call.1} parent=0
    #allocation3 [shape = 'u8[8192]{0}', space=vmem, size = 0x2000, scoped, tag = 'input window, operand 0']
    #allocation4 [shape = 's32[2]{0}', space=sflag, size = 0x8, scoped, tag = 'scoped memory for tpu_custom_call.1']
    #allocation5 [shape = 's32[2]{0}', space=sflag, size = 0x8, scoped, tag = 'scoped memory for tpu_custom_call.1']
    #allocation6 [shape = 'u8[4096]{0}', space=vmem, size = 0x1000, scoped, tag = 'input window, operand 1, single buffered']
    #allocation7 [shape = 's32[1]{0}', space=sflag, size = 0x4, scoped, tag = 'scoped memory for tpu_custom_call.1']
    #allocation8 [shape = 'u8[65536]{0}', space=vmem, size = 0x10000, scoped, tag = 'input window, operand 2, single buffered']
    #allocation9 [shape = 'u8[65536]{0}', space=vmem, size = 0x10000, scoped, tag = 'input window, operand 3, single buffered']
    #allocation10 [shape = 's32[1]{0}', space=sflag, size = 0x4, scoped, tag = 'scoped memory for tpu_custom_call.1']
    #allocation11 [shape = 'u8[65536]{0}', space=vmem, size = 0x10000, scoped, tag = 'input window, operand 5, single buffered']
    #allocation12 [shape = 'u8[8192]{0}', space=vmem, size = 0x2000, scoped, tag = 'output window, operand 0']
    #allocation13 [shape = 'u8[4096]{0}', space=vmem, size = 0x1000, scoped, tag = 'output window, operand 1, single buffered']
    #allocation14 [shape = 's32[1]{0}', space=sflag, size = 0x4, scoped, tag = 'scoped memory for tpu_custom_call.1']
    %14 = vsyncpa [#allocation4], 0
    %s15 = scalar_lea.sflag [#allocation4], 1
    %16 = vsyncpa %s15, 0
    %17 = vsyncpa [#allocation7], 0
    %18 = vsyncpa [#allocation10], 0
    %19 = vsyncpa [#allocation5], 0
    %s20 = scalar_lea.sflag [#allocation5], 1
    %21 = vsyncpa %s20, 0
    %22 = vsyncpa [#allocation14], 0
    loop: start=0, step=1, limit=10
    $region2: #{tpu_custom_call.1} parent=1 // loop_pre_header
      _
    $region3: #{tpu_custom_call.1} parent=1 // loop_header
      %s24 = sphi 0, %s28
      %p25 = scmp.ge.s32.totalorder %s24, 10
      %s34 = sphi 0, %s36
      %s37 = sphi 0, %s34
      %s38 = sphi 0, %s37
      %s54 = sphi 0, %s38
      %s58 = sphi 0, %s58
      %s60 = sphi 0, %s58
      %s61 = sphi 0, %s60
      %s75 = sphi 0, %s61
      %s79 = sphi 0, %s79
      %s81 = sphi 0, %s79
      %s82 = sphi 0, %s81
      %s96 = sphi 0, %s82
      %s100 = sphi 0, %s100
      %s102 = sphi 0, %s100
      %s103 = sphi 0, %s102
      %s117 = sphi 0, %s103
      %s121 = sphi 0, %s121
      %s123 = sphi 0, %s121
      %s124 = sphi 0, %s123
      %s138 = sphi 0, %s124
      %s142 = sphi 0, %s142
      %s144 = sphi 0, %s142
      %s145 = sphi 0, %s144
      %s159 = sphi 0, %s145
      %s163 = sphi 0, %s163
      %s165 = sphi 0, %s163
      %s166 = sphi 0, %s165
      %s180 = sphi 0, %s166
      %s186 = sphi 0, %s188
      %s189 = sphi 0, %s186
      %s190 = sphi 0, %s189
      %s206 = sphi 0, %s190
      %s210 = sphi 0, %s210
      %s212 = sphi 0, %s210
      %s213 = sphi 0, %s212
      %s227 = sphi 0, %s213
    $region4: #{tpu_custom_call.1} parent=1 // loop_header_branch
      %27 = sbr.rel (%p25) target = $region8
    $region5: #{tpu_custom_call.1} parent=1 // loop_body
      %s29 = ssub.s32 %s24, 1
      %s30 = ssub.s32 %s24, 2
      %s31 = sadd.s32 %s24, 1
      %s32 = ssub.s32 %s24, %s31
      %p33 = scmp.eq.s32.totalorder %s32, 0
      %s35 = sadd.s32 %s34, 1
      %s36 = scalar_select %p33, %s34, %s35
      %p39 = pneg %p33
      %p40 = scmp.eq.s32.totalorder %s24, 7
      %p41 = por %p39, %p40
      %p42 = scmp.ne.s32.totalorder %s34, %s37
      %p43 = scmp.eq.s32.totalorder %s24, 0
      %p44 = por %p42, %p43
      %p45 = scmp.ne.s32.totalorder %s34, %s37
      %p46 = scmp.eq.s32.totalorder %s29, 7
      %p47 = por %p45, %p46
      %p48 = scmp.ne.s32.totalorder %s37, %s38
      %p49 = scmp.eq.s32.totalorder %s29, 0
      %p50 = por %p48, %p49
      %p51 = scmp.ne.s32.totalorder %s37, %s38
      %p52 = scmp.eq.s32.totalorder %s30, 7
      %p53 = por %p51, %p52
      %p55 = scmp.ne.s32.totalorder %s38, %s54
      %p56 = scmp.eq.s32.totalorder %s30, 0
      %p57 = por %p55, %p56
      %s59 = sadd.s32 %s58, 1
      %p62 = scmp.eq.s32.totalorder %s24, 7
      %p63 = scmp.ne.s32.totalorder %s58, %s60
      %p64 = scmp.eq.s32.totalorder %s24, 0
      %p65 = por %p63, %p64
      %p66 = scmp.ne.s32.totalorder %s58, %s60
      %p67 = scmp.eq.s32.totalorder %s29, 7
      %p68 = por %p66, %p67
      %p69 = scmp.ne.s32.totalorder %s60, %s61
      %p70 = scmp.eq.s32.totalorder %s29, 0
      %p71 = por %p69, %p70
      %p72 = scmp.ne.s32.totalorder %s60, %s61
      %p73 = scmp.eq.s32.totalorder %s30, 7
      %p74 = por %p72, %p73
      %p76 = scmp.ne.s32.totalorder %s61, %s75
      %p77 = scmp.eq.s32.totalorder %s30, 0
      %p78 = por %p76, %p77
      %s80 = sadd.s32 %s79, 1
      %p83 = scmp.eq.s32.totalorder %s24, 7
      %p84 = scmp.ne.s32.totalorder %s79, %s81
      %p85 = scmp.eq.s32.totalorder %s24, 0
      %p86 = por %p84, %p85
      %p87 = scmp.ne.s32.totalorder %s79, %s81
      %p88 = scmp.eq.s32.totalorder %s29, 7
      %p89 = por %p87, %p88
      %p90 = scmp.ne.s32.totalorder %s81, %s82
      %p91 = scmp.eq.s32.totalorder %s29, 0
      %p92 = por %p90, %p91
      %p93 = scmp.ne.s32.totalorder %s81, %s82
      %p94 = scmp.eq.s32.totalorder %s30, 7
      %p95 = por %p93, %p94
      %p97 = scmp.ne.s32.totalorder %s82, %s96
      %p98 = scmp.eq.s32.totalorder %s30, 0
      %p99 = por %p97, %p98
      %s101 = sadd.s32 %s100, 1
      %p104 = scmp.eq.s32.totalorder %s24, 7
      %p105 = scmp.ne.s32.totalorder %s100, %s102
      %p106 = scmp.eq.s32.totalorder %s24, 0
      %p107 = por %p105, %p106
      %p108 = scmp.ne.s32.totalorder %s100, %s102
      %p109 = scmp.eq.s32.totalorder %s29, 7
      %p110 = por %p108, %p109
      %p111 = scmp.ne.s32.totalorder %s102, %s103
      %p112 = scmp.eq.s32.totalorder %s29, 0
      %p113 = por %p111, %p112
      %p114 = scmp.ne.s32.totalorder %s102, %s103
      %p115 = scmp.eq.s32.totalorder %s30, 7
      %p116 = por %p114, %p115
      %p118 = scmp.ne.s32.totalorder %s103, %s117
      %p119 = scmp.eq.s32.totalorder %s30, 0
      %p120 = por %p118, %p119
      %s122 = sadd.s32 %s121, 1
      %p125 = scmp.eq.s32.totalorder %s24, 7
      %p126 = scmp.ne.s32.totalorder %s121, %s123
      %p127 = scmp.eq.s32.totalorder %s24, 0
      %p128 = por %p126, %p127
      %p129 = scmp.ne.s32.totalorder %s121, %s123
      %p130 = scmp.eq.s32.totalorder %s29, 7
      %p131 = por %p129, %p130
      %p132 = scmp.ne.s32.totalorder %s123, %s124
      %p133 = scmp.eq.s32.totalorder %s29, 0
      %p134 = por %p132, %p133
      %p135 = scmp.ne.s32.totalorder %s123, %s124
      %p136 = scmp.eq.s32.totalorder %s30, 7
      %p137 = por %p135, %p136
      %p139 = scmp.ne.s32.totalorder %s124, %s138
      %p140 = scmp.eq.s32.totalorder %s30, 0
      %p141 = por %p139, %p140
      %s143 = sadd.s32 %s142, 1
      %p146 = scmp.eq.s32.totalorder %s24, 7
      %p147 = scmp.ne.s32.totalorder %s142, %s144
      %p148 = scmp.eq.s32.totalorder %s24, 0
      %p149 = por %p147, %p148
      %p150 = scmp.ne.s32.totalorder %s142, %s144
      %p151 = scmp.eq.s32.totalorder %s29, 7
      %p152 = por %p150, %p151
      %p153 = scmp.ne.s32.totalorder %s144, %s145
      %p154 = scmp.eq.s32.totalorder %s29, 0
      %p155 = por %p153, %p154
      %p156 = scmp.ne.s32.totalorder %s144, %s145
      %p157 = scmp.eq.s32.totalorder %s30, 7
      %p158 = por %p156, %p157
      %p160 = scmp.ne.s32.totalorder %s145, %s159
      %p161 = scmp.eq.s32.totalorder %s30, 0
      %p162 = por %p160, %p161
      %s164 = sadd.s32 %s163, 1
      %p167 = scmp.eq.s32.totalorder %s24, 7
      %p168 = scmp.ne.s32.totalorder %s163, %s165
      %p169 = scmp.eq.s32.totalorder %s24, 0
      %p170 = por %p168, %p169
      %p171 = scmp.ne.s32.totalorder %s163, %s165
      %p172 = scmp.eq.s32.totalorder %s29, 7
      %p173 = por %p171, %p172
      %p174 = scmp.ne.s32.totalorder %s165, %s166
      %p175 = scmp.eq.s32.totalorder %s29, 0
      %p176 = por %p174, %p175
      %p177 = scmp.ne.s32.totalorder %s165, %s166
      %p178 = scmp.eq.s32.totalorder %s30, 7
      %p179 = por %p177, %p178
      %p181 = scmp.ne.s32.totalorder %s166, %s180
      %p182 = scmp.eq.s32.totalorder %s30, 0
      %p183 = por %p181, %p182
      %s184 = ssub.s32 %s24, %s31
      %p185 = scmp.eq.s32.totalorder %s184, 0
      %s187 = sadd.s32 %s186, 1
      %s188 = scalar_select %p185, %s186, %s187
      %p191 = pneg %p185
      %p192 = scmp.eq.s32.totalorder %s24, 7
      %p193 = por %p191, %p192
      %p194 = scmp.ne.s32.totalorder %s186, %s189
      %p195 = scmp.eq.s32.totalorder %s24, 0
      %p196 = por %p194, %p195
      %p197 = scmp.ne.s32.totalorder %s186, %s189
      %p198 = scmp.eq.s32.totalorder %s29, 7
      %p199 = por %p197, %p198
      %p200 = scmp.ne.s32.totalorder %s189, %s190
      %p201 = scmp.eq.s32.totalorder %s29, 0
      %p202 = por %p200, %p201
      %p203 = scmp.ne.s32.totalorder %s189, %s190
      %p204 = scmp.eq.s32.totalorder %s30, 7
      %p205 = por %p203, %p204
      %p207 = scmp.ne.s32.totalorder %s190, %s206
      %p208 = scmp.eq.s32.totalorder %s30, 0
      %p209 = por %p207, %p208
      %s211 = sadd.s32 %s210, 1
      %p214 = scmp.eq.s32.totalorder %s24, 7
      %p215 = scmp.ne.s32.totalorder %s210, %s212
      %p216 = scmp.eq.s32.totalorder %s24, 0
      %p217 = por %p215, %p216
      %p218 = scmp.ne.s32.totalorder %s210, %s212
      %p219 = scmp.eq.s32.totalorder %s29, 7
      %p220 = por %p218, %p219
      %p221 = scmp.ne.s32.totalorder %s212, %s213
      %p222 = scmp.eq.s32.totalorder %s29, 0
      %p223 = por %p221, %p222
      %p224 = scmp.ne.s32.totalorder %s212, %s213
      %p225 = scmp.eq.s32.totalorder %s30, 7
      %p226 = por %p224, %p225
      %p228 = scmp.ne.s32.totalorder %s213, %s227
      %p229 = scmp.eq.s32.totalorder %s30, 0
      %p230 = por %p228, %p229
      %p231 = scmp.le.s32.totalorder 1, %s24
      %p232 = scmp.lt.s32.totalorder %s24, 9
      %p233 = pnand %p231, %p232
      %p234 = pneg %p233
      // Predicated region
      $region9: #{tpu_custom_call.1} parent=5 // pred_check
        _
      $region10: #{tpu_custom_call.1} parent=5 // pred_check_branch
        %236 = sbr.rel (%p233) target = $region12
      $region11: #{tpu_custom_call.1} parent=5 // pred_region
        %s237 = ssub.s32 %s24, 1
        // Predicated region
        $region13: #{tpu_custom_call.1} parent=11 // pred_check
          %p238 = pneg %p71
        $region14: #{tpu_custom_call.1} parent=11 // pred_check_branch
          %240 = sbr.rel (%p238) target = $region16
        $region15: #{tpu_custom_call.1} parent=11 // pred_region
          %242 = vsyncadd [#allocation7], 0
          %s244 = sshll.u32 %s1, 4
          %s245 = int_to_ptr.hbm [resolvable:$true] %s244
          %s246 = sshll.u32 [#allocation6], 4
          %s247 = int_to_ptr.vmem [resolvable:$true] %s246
          %249 = dma.hbm_to_vmem [thread:$0]  %s245, 128, %s247, [#allocation7]
        $region16: #{tpu_custom_call.1} parent=11 // pred_fallthru
          _
        // Predicated region
        $region17: #{tpu_custom_call.1} parent=11 // pred_check
          %p250 = pneg %p92
        $region18: #{tpu_custom_call.1} parent=11 // pred_check_branch
          %252 = sbr.rel (%p250) target = $region20
        $region19: #{tpu_custom_call.1} parent=11 // pred_region
          %254 = vsyncadd [#allocation7], 0
          %s255 = sshll.u32 %s2, 4
          %s256 = int_to_ptr.hbm [resolvable:$true] %s255
          %s257 = sshll.u32 [#allocation8], 4
          %s258 = int_to_ptr.vmem [resolvable:$true] %s257
          %263 = dma.hbm_to_vmem [thread:$0]  %s256, 2048, %s258, [#allocation7], 128, 128, 8
        $region20: #{tpu_custom_call.1} parent=11 // pred_fallthru
          _
        // Predicated region
        $region21: #{tpu_custom_call.1} parent=11 // pred_check
          %p264 = pneg %p113
        $region22: #{tpu_custom_call.1} parent=11 // pred_check_branch
          %266 = sbr.rel (%p264) target = $region24
        $region23: #{tpu_custom_call.1} parent=11 // pred_region
          %268 = vsyncadd [#allocation10], 0
          %s269 = sshll.u32 %s3, 4
          %s270 = int_to_ptr.hbm [resolvable:$true] %s269
          %s271 = sshll.u32 [#allocation9], 4
          %s272 = int_to_ptr.vmem [resolvable:$true] %s271
          %277 = dma.hbm_to_vmem [thread:$0]  %s270, 2048, %s272, [#allocation10], 128, 128, 8
        $region24: #{tpu_custom_call.1} parent=11 // pred_fallthru
          _
        // Predicated region
        $region25: #{tpu_custom_call.1} parent=11 // pred_check
          %p278 = pneg %p134
        $region26: #{tpu_custom_call.1} parent=11 // pred_check_branch
          %280 = sbr.rel (%p278) target = $region28
        $region27: #{tpu_custom_call.1} parent=11 // pred_region
          _
        $region28: #{tpu_custom_call.1} parent=11 // pred_fallthru
          _
        // Predicated region
        $region29: #{tpu_custom_call.1} parent=11 // pred_check
          %p281 = pneg %p155
        $region30: #{tpu_custom_call.1} parent=11 // pred_check_branch
          %283 = sbr.rel (%p281) target = $region32
        $region31: #{tpu_custom_call.1} parent=11 // pred_region
          %285 = vsyncadd [#allocation10], 0
          %s286 = sshll.u32 %s5, 4
          %s287 = int_to_ptr.hbm [resolvable:$true] %s286
          %s288 = sshll.u32 [#allocation11], 4
          %s289 = int_to_ptr.vmem [resolvable:$true] %s288
          %294 = dma.hbm_to_vmem [thread:$0]  %s287, 2048, %s289, [#allocation10], 128, 128, 8
        $region32: #{tpu_custom_call.1} parent=11 // pred_fallthru
          _
        // Predicated region
        $region33: #{tpu_custom_call.1} parent=11 // pred_check
          %p295 = pneg %p176
        $region34: #{tpu_custom_call.1} parent=11 // pred_check_branch
          %297 = sbr.rel (%p295) target = $region36
        $region35: #{tpu_custom_call.1} parent=11 // pred_region
          _
        $region36: #{tpu_custom_call.1} parent=11 // pred_fallthru
          _
      $region12: #{tpu_custom_call.1} parent=5 // pred_fallthru
        _
      %p298 = scmp.lt.s32.totalorder %s24, 8
      // Predicated region
      $region37: #{tpu_custom_call.1} parent=5 // pred_check
        %p299 = pneg %p298
      $region38: #{tpu_custom_call.1} parent=5 // pred_check_branch
        %301 = sbr.rel (%p299) target = $region40
      $region39: #{tpu_custom_call.1} parent=5 // pred_region
        // Predicated region
        $region41: #{tpu_custom_call.1} parent=39 // pred_check
          %p302 = pneg %p44
        $region42: #{tpu_custom_call.1} parent=39 // pred_check_branch
          %304 = sbr.rel (%p302) target = $region44
        $region43: #{tpu_custom_call.1} parent=39 // pred_region
          %s305 = sand.u32 %s34, 1
          %s306 = scalar_lea.sflag [#allocation4], %s305
          %s307 = sand.u32 %s34, 1
          %s308 = smul.addr %s307, 8
          %s309 = scalar_lea.vmem [#allocation3], %s308
          %311 = vsyncadd %s306, 0
          %s312 = smul.addr %s24, 8
          %s313 = scalar_lea.hbm %s0, %s312
          %s315 = sshll.u32 %s313, 4
          %s316 = int_to_ptr.hbm [resolvable:$true] %s315
          %s317 = sshll.u32 %s309, 4
          %s318 = int_to_ptr.vmem [resolvable:$true] %s317
          %320 = dma.hbm_to_vmem [thread:$0]  %s316, 128, %s318, %s306
        $region44: #{tpu_custom_call.1} parent=39 // pred_fallthru
          _
      $region40: #{tpu_custom_call.1} parent=5 // pred_fallthru
        _
      %p321 = scmp.le.s32.totalorder 1, %s24
      %p322 = scmp.lt.s32.totalorder %s24, 9
      %p323 = pnand %p321, %p322
      %p324 = pneg %p323
      // Predicated region
      $region45: #{tpu_custom_call.1} parent=5 // pred_check
        _
      $region46: #{tpu_custom_call.1} parent=5 // pred_check_branch
        %326 = sbr.rel (%p323) target = $region48
      $region47: #{tpu_custom_call.1} parent=5 // pred_region
        %s327 = ssub.s32 %s24, 1
        %s328 = sand.u32 %s37, 1
        %s329 = scalar_lea.sflag [#allocation4], %s328
        %s330 = sand.u32 %s37, 1
        %s331 = smul.addr %s330, 8
        %s332 = scalar_lea.vmem [#allocation3], %s331
        // Predicated region
        $region49: #{tpu_custom_call.1} parent=47 // pred_check
          %p333 = pneg %p50
        $region50: #{tpu_custom_call.1} parent=47 // pred_check_branch
          %335 = sbr.rel (%p333) target = $region52
        $region51: #{tpu_custom_call.1} parent=47 // pred_region
          %337 = dma.done %s329, 128
        $region52: #{tpu_custom_call.1} parent=47 // pred_fallthru
          _
        // Predicated region
        $region53: #{tpu_custom_call.1} parent=47 // pred_check
          %p338 = pneg %p71
        $region54: #{tpu_custom_call.1} parent=47 // pred_check_branch
          %340 = sbr.rel (%p338) target = $region56
        $region55: #{tpu_custom_call.1} parent=47 // pred_region
          %342 = dma.done [#allocation7], 128
        $region56: #{tpu_custom_call.1} parent=47 // pred_fallthru
          _
        // Predicated region
        $region57: #{tpu_custom_call.1} parent=47 // pred_check
          %p343 = pneg %p92
        $region58: #{tpu_custom_call.1} parent=47 // pred_check_branch
          %345 = sbr.rel (%p343) target = $region60
        $region59: #{tpu_custom_call.1} parent=47 // pred_region
          %347 = dma.done [#allocation7], 2048
        $region60: #{tpu_custom_call.1} parent=47 // pred_fallthru
          _
        // Predicated region
        $region61: #{tpu_custom_call.1} parent=47 // pred_check
          %p348 = pneg %p113
        $region62: #{tpu_custom_call.1} parent=47 // pred_check_branch
          %350 = sbr.rel (%p348) target = $region64
        $region63: #{tpu_custom_call.1} parent=47 // pred_region
          %352 = dma.done [#allocation10], 2048
        $region64: #{tpu_custom_call.1} parent=47 // pred_fallthru
          _
        // Predicated region
        $region65: #{tpu_custom_call.1} parent=47 // pred_check
          %p353 = pneg %p155
        $region66: #{tpu_custom_call.1} parent=47 // pred_check_branch
          %355 = sbr.rel (%p353) target = $region68
        $region67: #{tpu_custom_call.1} parent=47 // pred_region
          %357 = dma.done [#allocation10], 2048
        $region68: #{tpu_custom_call.1} parent=47 // pred_fallthru
          _
        %s358 = sand.u32 %s37, 1
        %s359 = scalar_lea.sflag [#allocation4], %s358
        %s360 = sand.u32 %s37, 1
        %s361 = smul.addr %s360, 8
        %s362 = scalar_lea.vmem [#allocation3], %s361
        %p363 = pneg %p50
        %p364 = pneg %p47
        %p365 = pneg %p71
        %p366 = pneg %p68
        %p367 = pneg %p92
        %p368 = pneg %p89
        %p369 = pneg %p113
        %p370 = pneg %p110
        %p371 = pneg %p134
        %p372 = pneg %p131
        %p373 = pneg %p155
        %p374 = pneg %p152
        %p375 = pneg %p176
        %p376 = pneg %p173
        %p377 = pneg %p202
        %p378 = pneg %p199
        %s379 = sand.u32 %s189, 1
        %s380 = scalar_lea.sflag [#allocation5], %s379
        %s381 = sand.u32 %s189, 1
        %s382 = smul.addr %s381, 8
        %s383 = scalar_lea.vmem [#allocation12], %s382
        %p384 = pneg %p223
        %p385 = pneg %p220
        %p386 = scmp.eq.s32.totalorder %s29, 0
        // Predicated region
        $region69: #{tpu_custom_call.1} parent=47 // pred_check
          %p387 = pneg %p386
        $region70: #{tpu_custom_call.1} parent=47 // pred_check_branch
          %389 = sbr.rel (%p387) target = $region72
        $region71: #{tpu_custom_call.1} parent=47 // pred_region
          %v390 = vld [vmem:[#allocation6] sm:$0xff]
          %391 = vst [vmem:[#allocation2] sm:$0xff] %v390
        $region72: #{tpu_custom_call.1} parent=47 // pred_fallthru
          _
        %v392 = vld [vmem:[#allocation2] sm:$0xff]
        %v393 = vld [vmem:[%s332] sm:$0xff]
        %v394 = vld [vmem:[#allocation8] sm:$0xff]
        %v395 = vld [vmem:[#allocation8 + $0x8] sm:$0xff]
        %v396 = vld [vmem:[#allocation8 + $0x10] sm:$0xff]
        %v397 = vld [vmem:[#allocation8 + $0x18] sm:$0xff]
        %v398 = vld [vmem:[#allocation8 + $0x20] sm:$0xff]
        %v399 = vld [vmem:[#allocation8 + $0x28] sm:$0xff]
        %v400 = vld [vmem:[#allocation8 + $0x30] sm:$0xff]
        %v401 = vld [vmem:[#allocation8 + $0x38] sm:$0xff]
        %v402 = vld [vmem:[#allocation8 + $0x40] sm:$0xff]
        %v403 = vld [vmem:[#allocation8 + $0x48] sm:$0xff]
        %v404 = vld [vmem:[#allocation8 + $0x50] sm:$0xff]
        %v405 = vld [vmem:[#allocation8 + $0x58] sm:$0xff]
        %v406 = vld [vmem:[#allocation8 + $0x60] sm:$0xff]
        %v407 = vld [vmem:[#allocation8 + $0x68] sm:$0xff]
        %v408 = vld [vmem:[#allocation8 + $0x70] sm:$0xff]
        %v409 = vld [vmem:[#allocation8 + $0x78] sm:$0xff]
        %v410 = vld [vmem:[#allocation9] sm:$0xff]
        %v411 = vld [vmem:[#allocation9 + $0x8] sm:$0xff]
        %v412 = vld [vmem:[#allocation9 + $0x10] sm:$0xff]
        %v413 = vld [vmem:[#allocation9 + $0x18] sm:$0xff]
        %v414 = vld [vmem:[#allocation9 + $0x20] sm:$0xff]
        %v415 = vld [vmem:[#allocation9 + $0x28] sm:$0xff]
        %v416 = vld [vmem:[#allocation9 + $0x30] sm:$0xff]
        %v417 = vld [vmem:[#allocation9 + $0x38] sm:$0xff]
        %v418 = vld [vmem:[#allocation9 + $0x40] sm:$0xff]
        %v419 = vld [vmem:[#allocation9 + $0x48] sm:$0xff]
        %v420 = vld [vmem:[#allocation9 + $0x50] sm:$0xff]
        %v421 = vld [vmem:[#allocation9 + $0x58] sm:$0xff]
        %v422 = vld [vmem:[#allocation9 + $0x60] sm:$0xff]
        %v423 = vld [vmem:[#allocation9 + $0x68] sm:$0xff]
        %v424 = vld [vmem:[#allocation9 + $0x70] sm:$0xff]
        %v425 = vld [vmem:[#allocation9 + $0x78] sm:$0xff]
        %426 = vmatpush.msra.mxu0 %v425
        %427 = vmatpush.msra.mxu0 %v424
        %428 = vmatpush.msra.mxu0 %v423
        %429 = vmatpush.msra.mxu0 %v422
        %430 = vmatpush.msra.mxu0 %v421
        %431 = vmatpush.msra.mxu0 %v420
        %432 = vmatpush.msra.mxu0 %v419
        %433 = vmatpush.msra.mxu0 %v418
        %434 = vmatpush.msra.mxu0 %v417
        %435 = vmatpush.msra.mxu0 %v416
        %436 = vmatpush.msra.mxu0 %v415
        %437 = vmatpush.msra.mxu0 %v414
        %438 = vmatpush.msra.mxu0 %v413
        %439 = vmatpush.msra.mxu0 %v412
        %440 = vmatpush.msra.mxu0 %v411
        %441 = vmatpush.msra.mxu0 %v410
        %442 = vmatmul.f32.gmra.mxu0 %v392
        %v443 = vpop.f32.mrf.mxu0
        %v444 = vadd.f32 0.0, %v443
        %445 = vdwg.mxu0
        %446 = vmatpush.msra.mxu0 %v409
        %447 = vmatpush.msra.mxu0 %v408
        %448 = vmatpush.msra.mxu0 %v407
        %449 = vmatpush.msra.mxu0 %v406
        %450 = vmatpush.msra.mxu0 %v405
        %451 = vmatpush.msra.mxu0 %v404
        %452 = vmatpush.msra.mxu0 %v403
        %453 = vmatpush.msra.mxu0 %v402
        %454 = vmatpush.msra.mxu0 %v401
        %455 = vmatpush.msra.mxu0 %v400
        %456 = vmatpush.msra.mxu0 %v399
        %457 = vmatpush.msra.mxu0 %v398
        %458 = vmatpush.msra.mxu0 %v397
        %459 = vmatpush.msra.mxu0 %v396
        %460 = vmatpush.msra.mxu0 %v395
        %461 = vmatpush.msra.mxu0 %v394
        %462 = vmatmul.f32.gmra.mxu0 %v393
        %v463 = vpop.f32.mrf.mxu0
        %v464 = vadd.f32 %v444, %v463
        %465 = vdwg.mxu0
        %v466 = vld [vmem:[%s4] sm:$0x1]
        %v468 = vperm.slane %v466, 0
        %v470 = vadd.f32 %v464, %v468
        %v471 = vtanh.pop %v470
        %v472 = vld [vmem:[#allocation11] sm:$0xff]
        %v473 = vld [vmem:[#allocation11 + $0x8] sm:$0xff]
        %v474 = vld [vmem:[#allocation11 + $0x10] sm:$0xff]
        %v475 = vld [vmem:[#allocation11 + $0x18] sm:$0xff]
        %v476 = vld [vmem:[#allocation11 + $0x20] sm:$0xff]
        %v477 = vld [vmem:[#allocation11 + $0x28] sm:$0xff]
        %v478 = vld [vmem:[#allocation11 + $0x30] sm:$0xff]
        %v479 = vld [vmem:[#allocation11 + $0x38] sm:$0xff]
        %v480 = vld [vmem:[#allocation11 + $0x40] sm:$0xff]
        %v481 = vld [vmem:[#allocation11 + $0x48] sm:$0xff]
        %v482 = vld [vmem:[#allocation11 + $0x50] sm:$0xff]
        %v483 = vld [vmem:[#allocation11 + $0x58] sm:$0xff]
        %v484 = vld [vmem:[#allocation11 + $0x60] sm:$0xff]
        %v485 = vld [vmem:[#allocation11 + $0x68] sm:$0xff]
        %v486 = vld [vmem:[#allocation11 + $0x70] sm:$0xff]
        %v487 = vld [vmem:[#allocation11 + $0x78] sm:$0xff]
        %v488 = vld [vmem:[%s6] sm:$0x1]
        %v490 = vperm.slane %v488, 0
        %492 = vmatpush.msra.mxu0 %v487
        %493 = vmatpush.msra.mxu0 %v486
        %494 = vmatpush.msra.mxu0 %v485
        %495 = vmatpush.msra.mxu0 %v484
        %496 = vmatpush.msra.mxu0 %v483
        %497 = vmatpush.msra.mxu0 %v482
        %498 = vmatpush.msra.mxu0 %v481
        %499 = vmatpush.msra.mxu0 %v480
        %500 = vmatpush.msra.mxu0 %v479
        %501 = vmatpush.msra.mxu0 %v478
        %502 = vmatpush.msra.mxu0 %v477
        %503 = vmatpush.msra.mxu0 %v476
        %504 = vmatpush.msra.mxu0 %v475
        %505 = vmatpush.msra.mxu0 %v474
        %506 = vmatpush.msra.mxu0 %v473
        %507 = vmatpush.msra.mxu0 %v472
        %508 = vmatmul.f32.gmra.mxu0 %v471
        %v509 = vpop.f32.mrf.mxu0
        %v510 = vadd.f32 %v490, %v509
        %511 = vdwg.mxu0
        %512 = vst [vmem:[%s383] sm:$0xff] %v510
        %513 = vst [vmem:[#allocation2] sm:$0xff] %v471
        %p514 = scmp.eq.s32.totalorder %s29, 7
        // Predicated region
        $region73: #{tpu_custom_call.1} parent=47 // pred_check
          %p515 = pneg %p514
        $region74: #{tpu_custom_call.1} parent=47 // pred_check_branch
          %517 = sbr.rel (%p515) target = $region76
        $region75: #{tpu_custom_call.1} parent=47 // pred_region
          %518 = vst [vmem:[#allocation13] sm:$0xff] %v471
        $region76: #{tpu_custom_call.1} parent=47 // pred_fallthru
          _
        %s519 = sand.u32 %s189, 1
        %s520 = scalar_lea.sflag [#allocation5], %s519
        %s521 = sand.u32 %s189, 1
        %s522 = smul.addr %s521, 8
        %s523 = scalar_lea.vmem [#allocation12], %s522
        // Predicated region
        $region77: #{tpu_custom_call.1} parent=47 // pred_check
          %p524 = pneg %p199
        $region78: #{tpu_custom_call.1} parent=47 // pred_check_branch
          %526 = sbr.rel (%p524) target = $region80
        $region79: #{tpu_custom_call.1} parent=47 // pred_region
          %528 = vsyncadd %s520, 0
          %s529 = smul.addr %s29, 8
          %s530 = scalar_lea.hbm %s7, %s529
          %s532 = sshll.u32 %s523, 4
          %s533 = int_to_ptr.vmem [resolvable:$true] %s532
          %s534 = sshll.u32 %s530, 4
          %s535 = int_to_ptr.hbm [resolvable:$true] %s534
          %537 = dma.vmem_to_hbm [thread:$0]  %s533, 128, %s535, %s520
        $region80: #{tpu_custom_call.1} parent=47 // pred_fallthru
          _
        // Predicated region
        $region81: #{tpu_custom_call.1} parent=47 // pred_check
          %p538 = pneg %p220
        $region82: #{tpu_custom_call.1} parent=47 // pred_check_branch
          %540 = sbr.rel (%p538) target = $region84
        $region83: #{tpu_custom_call.1} parent=47 // pred_region
          %542 = vsyncadd [#allocation14], 0
          %s544 = sshll.u32 [#allocation13], 4
          %s545 = int_to_ptr.vmem [resolvable:$true] %s544
          %s546 = sshll.u32 %s8, 4
          %s547 = int_to_ptr.hbm [resolvable:$true] %s546
          %549 = dma.vmem_to_hbm [thread:$0]  %s545, 128, %s547, [#allocation14]
        $region84: #{tpu_custom_call.1} parent=47 // pred_fallthru
          _
        // Predicated region
        $region85: #{tpu_custom_call.1} parent=47 // pred_check
          %p550 = pneg %p220
        $region86: #{tpu_custom_call.1} parent=47 // pred_check_branch
          %552 = sbr.rel (%p550) target = $region88
        $region87: #{tpu_custom_call.1} parent=47 // pred_region
          %554 = dma.done [#allocation14], 128
        $region88: #{tpu_custom_call.1} parent=47 // pred_fallthru
          _
      $region48: #{tpu_custom_call.1} parent=5 // pred_fallthru
        _
      %p555 = scmp.le.s32.totalorder 2, %s24
      // Predicated region
      $region89: #{tpu_custom_call.1} parent=5 // pred_check
        %p556 = pneg %p555
      $region90: #{tpu_custom_call.1} parent=5 // pred_check_branch
        %558 = sbr.rel (%p556) target = $region92
      $region91: #{tpu_custom_call.1} parent=5 // pred_region
        %s559 = ssub.s32 %s24, 2
        // Predicated region
        $region93: #{tpu_custom_call.1} parent=91 // pred_check
          %p560 = pneg %p205
        $region94: #{tpu_custom_call.1} parent=91 // pred_check_branch
          %562 = sbr.rel (%p560) target = $region96
        $region95: #{tpu_custom_call.1} parent=91 // pred_region
          %s563 = sand.u32 %s190, 1
          %s564 = scalar_lea.sflag [#allocation5], %s563
          %s565 = sand.u32 %s190, 1
          %s566 = smul.addr %s565, 8
          %s567 = scalar_lea.vmem [#allocation12], %s566
          %569 = dma.done %s564, 128
        $region96: #{tpu_custom_call.1} parent=91 // pred_fallthru
          _
      $region92: #{tpu_custom_call.1} parent=5 // pred_fallthru
        _
    $region6: #{tpu_custom_call.1} parent=1 // loop_footer
      %s28 = sadd.s32 1, %s24
    $region7: #{tpu_custom_call.1} parent=1 // loop_footer_branch
      %23 = sbr.rel target = $region3
    $region8: #{tpu_custom_call.1} parent=1 // loop_exit
      _
    %570 = vsyncpa [#allocation4], 1
    %s571 = scalar_lea.sflag [#allocation4], 1
    %572 = vsyncpa %s571, 1
    %573 = vsyncpa [#allocation7], 1
    %574 = vsyncpa [#allocation10], 1
    %575 = vsyncpa [#allocation5], 1
    %s576 = scalar_lea.sflag [#allocation5], 1
    %577 = vsyncpa %s576, 1
    %578 = vsyncpa [#allocation14], 1

</llo_original>
